<compile_context>
chip_gen: v7x
topology: tpu7x:2x2x1
jax: 0.10.0
libtpu: 0.0.40
codegen_flags: <defaults>
</compile_context>

<pallas_src>
import functools

import jax
import jax.numpy as jnp
import numpy as np
from jax.experimental import pallas as pl
from jax.experimental.pallas import tpu as pltpu


def rts_kernel(x_ref, w_ref, o_ref, *, C, nc, HW):
    """x_ref: (B, C//2, 2*HW) lane-dense;  w_ref: (3C+8, C);  o_ref: (B, C)."""
    eps = 1e-5
    Ch = C // 2

    # BN / bias vectors packed at the bottom of the weight slab.
    g1 = w_ref[3 * C + 0:3 * C + 1, :]
    be1 = w_ref[3 * C + 1:3 * C + 2, :]
    g2 = w_ref[3 * C + 2:3 * C + 3, :]
    be2 = w_ref[3 * C + 3:3 * C + 4, :]
    bh = w_ref[3 * C + 4:3 * C + 5, :]

    # AvgPool2d(8, stride=1) on an 8x8 map + Flatten, fused with the first Linear.
    # Lanes [0:HW) of row r hold channel 2r, lanes [HW:2HW) hold channel 2r+1.
    x = x_ref[...]                                                   # (B, C//2, 2HW)
    lane = jax.lax.broadcasted_iota(jnp.int32, (1, 1, 2 * HW), 2)
    lo = jnp.sum(jnp.where(lane < HW, x, 0.0), axis=-1)             # (B, C//2) even-ch sums
    hi = jnp.sum(jnp.where(lane < HW, 0.0, x), axis=-1)             # (B, C//2) odd-ch sums

    # --- pipe block 1: Linear -> BatchNorm1d (training stats) -> ReLU ---
    # 1/HW pooling mean and even/odd channel reorder are folded into the w1 rows;
    # Linear bias b1 omitted (cancels exactly under training-mode BN).
    h = (jnp.dot(lo, w_ref[0:Ch, :], preferred_element_type=jnp.float32)
         + jnp.dot(hi, w_ref[Ch:C, :], preferred_element_type=jnp.float32))
    mu = jnp.mean(h, axis=0, keepdims=True)
    d = h - mu
    var = jnp.mean(d * d, axis=0, keepdims=True)                    # biased var (PyTorch BN fwd)
    h = jnp.maximum(g1 * d * jax.lax.rsqrt(var + eps) + be1, 0.0)

    # --- pipe block 2 ---
    h = jnp.dot(h, w_ref[C:2 * C, :], preferred_element_type=jnp.float32)
    mu = jnp.mean(h, axis=0, keepdims=True)
    d = h - mu
    var = jnp.mean(d * d, axis=0, keepdims=True)
    feat = jnp.maximum(g2 * d * jax.lax.rsqrt(var + eps) + be2, 0.0)  # (B, C)

    # --- fused heads: ONE MXU push.  Columns:
    #   [0:3nc]   = R (wr1@wr2 pre-folded on host) -> raw, then *2-1
    #   [3nc:6nc] = T pre-activation               -> sigmoid, then *2-1
    #   [6nc:7nc] = S pre-activation               -> sigmoid
    head = jnp.dot(feat, w_ref[2 * C:3 * C, :],
                   preferred_element_type=jnp.float32) + bh          # (B, C)
    sig = 1.0 / (1.0 + jnp.exp(-head))
    col = jax.lax.broadcasted_iota(jnp.int32, head.shape, 1)
    merged = jnp.where(col < 3 * nc, head, sig)
    o_ref[...] = jnp.where(col < 6 * nc, merged * 2.0 - 1.0, merged)


def rts_regressor(x_nchw, w_slab, num_cluster=1):
    """x_nchw: (B, C, 8, 8) f32.  w_slab: (3C+8, C) packed weights.  Returns (R, T, S)."""
    B, C, H, W = x_nchw.shape
    nc = num_cluster
    assert H == 8 and W == 8, "AvgPool2d(8, stride=1) implies an 8x8 spatial map"
    assert C % 128 == 0, "feature dim must be lane-dense"
    assert 7 * nc <= C, "head packing needs room in C lanes"
    HW = H * W

    # Free reshape of contiguous NCHW to a lane-dense (B, C//2, 128) slab.
    x = x_nchw.reshape(B, C // 2, 2 * HW)

    vmem = pl.BlockSpec(memory_space=pltpu.MemorySpace.VMEM)
    cost = pl.CostEstimate(
        flops=6 * B * C * C,
        transcendentals=B * C,
        bytes_accessed=x.size * 4 + w_slab.size * 4 + B * C * 4,
    )
    out = pl.pallas_call(
        functools.partial(rts_kernel, C=C, nc=nc, HW=HW),
        out_shape=jax.ShapeDtypeStruct((B, C), jnp.float32),
        in_specs=[vmem, vmem],
        out_specs=vmem,
        cost_estimate=cost,
    )(x, w_slab)

    R = out[:, 0:3 * nc]
    T = out[:, 3 * nc:6 * nc]
    S = out[:, 6 * nc:7 * nc]
    return R, T, S


def init_params(key, filters, num_cluster):
    """Raw parameters. Linear weights stored as (in, out) (transposed vs. PyTorch);
    biases / BN params as 1-D vectors."""
    ks = jax.random.split(key, 16)
    C, C2, nc3, nc = filters, filters // 2, 3 * num_cluster, num_cluster

    def lin(kw, kb, fan_in, fan_out):
        bound = 1.0 / np.sqrt(fan_in)
        w = jax.random.uniform(kw, (fan_in, fan_out), jnp.float32, -bound, bound)
        b = jax.random.uniform(kb, (fan_out,), jnp.float32, -bound, bound)
        return w, b

    w1, b1 = lin(ks[0], ks[1], C, C)
    w2, b2 = lin(ks[2], ks[3], C, C)
    wr1, br1 = lin(ks[4], ks[5], C, C2)
    wr2, br2 = lin(ks[6], ks[7], C2, nc3)
    wt, bt = lin(ks[8], ks[9], C, nc3)
    ws, bs = lin(ks[10], ks[11], C, nc)

    g1 = 1.0 + 0.1 * jax.random.normal(ks[12], (C,), jnp.float32)
    be1 = 0.1 * jax.random.normal(ks[13], (C,), jnp.float32)
    g2 = 1.0 + 0.1 * jax.random.normal(ks[14], (C,), jnp.float32)
    be2 = 0.1 * jax.random.normal(ks[15], (C,), jnp.float32)

    return dict(w1=w1, b1=b1, g1=g1, be1=be1,
                w2=w2, b2=b2, g2=g2, be2=be2,
                wr1=wr1, br1=br1, wr2=wr2, br2=br2,
                wt=wt, bt=bt, ws=ws, bs=bs)


def pack_params(p, filters, num_cluster, HW=64):
    """Pack everything into ONE (3C+8, C) f32 slab:
       rows [0:C//2]    = w1[even channels] / HW   (pooling mean folded in)
       rows [C//2:C]    = w1[odd channels]  / HW
       rows [C:2C]      = w2
       rows [2C:3C]     = fused head:  cols [0:3nc]=wr1@wr2, [3nc:6nc]=wt, [6nc:7nc]=ws
       rows [3C:3C+8]   = g1, be1, g2, be2, head-bias, padding."""
    C, nc = filters, num_cluster

    w1 = np.asarray(p["w1"], np.float64)
    w1_even = w1[0::2, :] / HW
    w1_odd = w1[1::2, :] / HW
    w2 = np.asarray(p["w2"], np.float64)

    # R head folded algebraically in float64, cast once to f32 at the end.
    W_R = np.asarray(p["wr1"], np.float64) @ np.asarray(p["wr2"], np.float64)       # (C, 3nc)
    b_R = (np.asarray(p["br1"], np.float64) @ np.asarray(p["wr2"], np.float64)
           + np.asarray(p["br2"], np.float64))                                       # (3nc,)

    wh = np.zeros((C, C), np.float64)
    wh[:, 0:3 * nc] = W_R
    wh[:, 3 * nc:6 * nc] = np.asarray(p["wt"], np.float64)
    wh[:, 6 * nc:7 * nc] = np.asarray(p["ws"], np.float64)

    vec = np.zeros((8, C), np.float64)
    vec[0] = np.asarray(p["g1"], np.float64)
    vec[1] = np.asarray(p["be1"], np.float64)
    vec[2] = np.asarray(p["g2"], np.float64)
    vec[3] = np.asarray(p["be2"], np.float64)
    vec[4, 0:3 * nc] = b_R
    vec[4, 3 * nc:6 * nc] = np.asarray(p["bt"], np.float64)
    vec[4, 6 * nc:7 * nc] = np.asarray(p["bs"], np.float64)
    # b1 / b2 intentionally not packed: they cancel exactly under training-mode BN.

    w_slab = np.concatenate([w1_even, w1_odd, w2, wh, vec], axis=0).astype(np.float32)
    return jnp.asarray(w_slab)                                                       # (3C+8, C)


def reference(x_nchw, p):
    """Pure-JAX reference mirroring the PyTorch forward (training-mode BN),
    including the b1/b2 biases and un-folded R head the kernel provably matches."""
    eps = 1e-5
    feat = jnp.mean(x_nchw, axis=(2, 3))              # AvgPool2d(8) + Flatten

    def bn(h, g, be):
        mu = jnp.mean(h, axis=0, keepdims=True)
        var = jnp.mean((h - mu) ** 2, axis=0, keepdims=True)
        return g * (h - mu) / jnp.sqrt(var + eps) + be

    h = jax.nn.relu(bn(feat @ p["w1"] + p["b1"], p["g1"], p["be1"]))
    h = jax.nn.relu(bn(h @ p["w2"] + p["b2"], p["g2"], p["be2"]))
    R = ((h @ p["wr1"] + p["br1"]) @ p["wr2"] + p["br2"]) * 2.0 - 1.0
    T = jax.nn.sigmoid(h @ p["wt"] + p["bt"]) * 2.0 - 1.0
    S = jax.nn.sigmoid(h @ p["ws"] + p["bs"])
    return R, T, S


if __name__ == "__main__":
    BATCH, FILTERS, NUM_CLUSTER = 4, 128, 1

    key = jax.random.PRNGKey(0)
    kx, kp = jax.random.split(key)
    x = jax.random.normal(kx, (BATCH, FILTERS, 8, 8), jnp.float32)   # NCHW
    params = init_params(kp, FILTERS, NUM_CLUSTER)
    w_slab = pack_params(params, FILTERS, NUM_CLUSTER)

    R, T, S = rts_regressor(x, w_slab, num_cluster=NUM_CLUSTER)
    jax.block_until_ready((R, T, S))

    R_ref, T_ref, S_ref = reference(x, params)
    np.testing.assert_allclose(np.asarray(R), np.asarray(R_ref), rtol=1e-4, atol=1e-4)
    np.testing.assert_allclose(np.asarray(T), np.asarray(T_ref), rtol=1e-4, atol=1e-4)
    np.testing.assert_allclose(np.asarray(S), np.asarray(S_ref), rtol=1e-4, atol=1e-4)

    print("KERNEL_OK")
</pallas_src>

<mosaic_0001>
module attributes {stable_mosaic.version = 11 : i64} {
  func.func @rts_kernel(%arg0: memref<4x64x128xf32, #tpu.memory_space<vmem>>, %arg1: memref<392x128xf32, #tpu.memory_space<vmem>>, %arg2: memref<4x128xf32, #tpu.memory_space<vmem>>) attributes {dimension_semantics = [], scalar_prefetch = 0 : i64, scratch_operands = 0 : i64, tpu.core_type = #tpu.core_type<tc>} {
    %c384 = arith.constant 384 : index
    %c0 = arith.constant 0 : index
    %0 = vector.load %arg1[%c384, %c0] : memref<392x128xf32, #tpu.memory_space<vmem>>, vector<1x128xf32>
    %c385 = arith.constant 385 : index
    %c0_0 = arith.constant 0 : index
    %1 = vector.load %arg1[%c385, %c0_0] : memref<392x128xf32, #tpu.memory_space<vmem>>, vector<1x128xf32>
    %c386 = arith.constant 386 : index
    %c0_1 = arith.constant 0 : index
    %2 = vector.load %arg1[%c386, %c0_1] : memref<392x128xf32, #tpu.memory_space<vmem>>, vector<1x128xf32>
    %c387 = arith.constant 387 : index
    %c0_2 = arith.constant 0 : index
    %3 = vector.load %arg1[%c387, %c0_2] : memref<392x128xf32, #tpu.memory_space<vmem>>, vector<1x128xf32>
    %c388 = arith.constant 388 : index
    %c0_3 = arith.constant 0 : index
    %4 = vector.load %arg1[%c388, %c0_3] : memref<392x128xf32, #tpu.memory_space<vmem>>, vector<1x128xf32>
    %c0_4 = arith.constant 0 : index
    %c0_5 = arith.constant 0 : index
    %c0_6 = arith.constant 0 : index
    %5 = vector.load %arg0[%c0_4, %c0_5, %c0_6] : memref<4x64x128xf32, #tpu.memory_space<vmem>>, vector<4x64x128xf32>
    %6 = tpu.iota {dimensions = array<i32: 2>} : vector<1x1x128xi32>
    %c64_i32 = arith.constant 64 : i32
    %7 = vector.broadcast %c64_i32 : i32 to vector<1x1x128xi32>
    %8 = arith.cmpi slt, %6, %7 : vector<1x1x128xi32>
    %cst = arith.constant 0.000000e+00 : f32
    %9 = vector.shape_cast %8 : vector<1x1x128xi1> to vector<1x1x128xi1>
    %10 = vector.broadcast %9 : vector<1x1x128xi1> to vector<4x64x128xi1>
    %11 = vector.broadcast %cst : f32 to vector<4x64x128xf32>
    %12 = arith.select %10, %5, %11 : vector<4x64x128xi1>, vector<4x64x128xf32>
    %cst_7 = arith.constant dense<0.000000e+00> : vector<4x64xf32>
    %13 = vector.multi_reduction <add>, %12, %cst_7 [2] : vector<4x64x128xf32> to vector<4x64xf32>
    %c64_i32_8 = arith.constant 64 : i32
    %14 = vector.broadcast %c64_i32_8 : i32 to vector<1x1x128xi32>
    %15 = arith.cmpi slt, %6, %14 : vector<1x1x128xi32>
    %cst_9 = arith.constant 0.000000e+00 : f32
    %16 = vector.shape_cast %15 : vector<1x1x128xi1> to vector<1x1x128xi1>
    %17 = vector.broadcast %16 : vector<1x1x128xi1> to vector<4x64x128xi1>
    %18 = vector.broadcast %cst_9 : f32 to vector<4x64x128xf32>
    %19 = arith.select %17, %18, %5 : vector<4x64x128xi1>, vector<4x64x128xf32>
    %cst_10 = arith.constant dense<0.000000e+00> : vector<4x64xf32>
    %20 = vector.multi_reduction <add>, %19, %cst_10 [2] : vector<4x64x128xf32> to vector<4x64xf32>
    %c0_11 = arith.constant 0 : index
    %c0_12 = arith.constant 0 : index
    %21 = vector.load %arg1[%c0_11, %c0_12] : memref<392x128xf32, #tpu.memory_space<vmem>>, vector<64x128xf32>
    %cst_13 = arith.constant dense<0.000000e+00> : vector<4x128xf32>
    %22 = tpu.matmul %13, %21, %cst_13 {dimension_numbers = #tpu.dot_dimension_numbers<[1], [0], [0], [1], [0, 0, 1, 1], [], []>} : vector<4x64xf32>, vector<64x128xf32>, vector<4x128xf32> -> vector<4x128xf32>
    %c64 = arith.constant 64 : index
    %c0_14 = arith.constant 0 : index
    %23 = vector.load %arg1[%c64, %c0_14] : memref<392x128xf32, #tpu.memory_space<vmem>>, vector<64x128xf32>
    %cst_15 = arith.constant dense<0.000000e+00> : vector<4x128xf32>
    %24 = tpu.matmul %20, %23, %cst_15 {dimension_numbers = #tpu.dot_dimension_numbers<[1], [0], [0], [1], [0, 0, 1, 1], [], []>} : vector<4x64xf32>, vector<64x128xf32>, vector<4x128xf32> -> vector<4x128xf32>
    %25 = arith.addf %22, %24 : vector<4x128xf32>
    %cst_16 = arith.constant dense<0.000000e+00> : vector<128xf32>
    %26 = vector.multi_reduction <add>, %25, %cst_16 [0] : vector<4x128xf32> to vector<128xf32>
    %27 = vector.shape_cast %26 : vector<128xf32> to vector<1x128xf32>
    %cst_17 = arith.constant 4.000000e+00 : f32
    %28 = vector.broadcast %cst_17 : f32 to vector<1x128xf32>
    %29 = arith.divf %27, %28 : vector<1x128xf32>
    %30 = vector.broadcast %29 : vector<1x128xf32> to vector<4x128xf32>
    %31 = arith.subf %25, %30 : vector<4x128xf32>
    %32 = arith.mulf %31, %31 : vector<4x128xf32>
    %cst_18 = arith.constant dense<0.000000e+00> : vector<128xf32>
    %33 = vector.multi_reduction <add>, %32, %cst_18 [0] : vector<4x128xf32> to vector<128xf32>
    %34 = vector.shape_cast %33 : vector<128xf32> to vector<1x128xf32>
    %cst_19 = arith.constant 4.000000e+00 : f32
    %35 = vector.broadcast %cst_19 : f32 to vector<1x128xf32>
    %36 = arith.divf %34, %35 : vector<1x128xf32>
    %37 = vector.broadcast %0 : vector<1x128xf32> to vector<4x128xf32>
    %38 = arith.mulf %37, %31 : vector<4x128xf32>
    %cst_20 = arith.constant 9.99999974E-6 : f32
    %39 = vector.broadcast %cst_20 : f32 to vector<1x128xf32>
    %40 = arith.addf %36, %39 : vector<1x128xf32>
    %41 = math.rsqrt %40 : vector<1x128xf32>
    %42 = vector.broadcast %41 : vector<1x128xf32> to vector<4x128xf32>
    %43 = arith.mulf %38, %42 : vector<4x128xf32>
    %44 = vector.broadcast %1 : vector<1x128xf32> to vector<4x128xf32>
    %45 = arith.addf %43, %44 : vector<4x128xf32>
    %cst_21 = arith.constant 0.000000e+00 : f32
    %46 = vector.broadcast %cst_21 : f32 to vector<4x128xf32>
    %47 = arith.maximumf %45, %46 : vector<4x128xf32>
    %c128 = arith.constant 128 : index
    %c0_22 = arith.constant 0 : index
    %48 = vector.load %arg1[%c128, %c0_22] : memref<392x128xf32, #tpu.memory_space<vmem>>, vector<128x128xf32>
    %cst_23 = arith.constant dense<0.000000e+00> : vector<4x128xf32>
    %49 = tpu.matmul %47, %48, %cst_23 {dimension_numbers = #tpu.dot_dimension_numbers<[1], [0], [0], [1], [0, 0, 1, 1], [], []>} : vector<4x128xf32>, vector<128x128xf32>, vector<4x128xf32> -> vector<4x128xf32>
    %cst_24 = arith.constant dense<0.000000e+00> : vector<128xf32>
    %50 = vector.multi_reduction <add>, %49, %cst_24 [0] : vector<4x128xf32> to vector<128xf32>
    %51 = vector.shape_cast %50 : vector<128xf32> to vector<1x128xf32>
    %cst_25 = arith.constant 4.000000e+00 : f32
    %52 = vector.broadcast %cst_25 : f32 to vector<1x128xf32>
    %53 = arith.divf %51, %52 : vector<1x128xf32>
    %54 = vector.broadcast %53 : vector<1x128xf32> to vector<4x128xf32>
    %55 = arith.subf %49, %54 : vector<4x128xf32>
    %56 = arith.mulf %55, %55 : vector<4x128xf32>
    %cst_26 = arith.constant dense<0.000000e+00> : vector<128xf32>
    %57 = vector.multi_reduction <add>, %56, %cst_26 [0] : vector<4x128xf32> to vector<128xf32>
    %58 = vector.shape_cast %57 : vector<128xf32> to vector<1x128xf32>
    %cst_27 = arith.constant 4.000000e+00 : f32
    %59 = vector.broadcast %cst_27 : f32 to vector<1x128xf32>
    %60 = arith.divf %58, %59 : vector<1x128xf32>
    %61 = vector.broadcast %2 : vector<1x128xf32> to vector<4x128xf32>
    %62 = arith.mulf %61, %55 : vector<4x128xf32>
    %cst_28 = arith.constant 9.99999974E-6 : f32
    %63 = vector.broadcast %cst_28 : f32 to vector<1x128xf32>
    %64 = arith.addf %60, %63 : vector<1x128xf32>
    %65 = math.rsqrt %64 : vector<1x128xf32>
    %66 = vector.broadcast %65 : vector<1x128xf32> to vector<4x128xf32>
    %67 = arith.mulf %62, %66 : vector<4x128xf32>
    %68 = vector.broadcast %3 : vector<1x128xf32> to vector<4x128xf32>
    %69 = arith.addf %67, %68 : vector<4x128xf32>
    %cst_29 = arith.constant 0.000000e+00 : f32
    %70 = vector.broadcast %cst_29 : f32 to vector<4x128xf32>
    %71 = arith.maximumf %69, %70 : vector<4x128xf32>
    %c256 = arith.constant 256 : index
    %c0_30 = arith.constant 0 : index
    %72 = vector.load %arg1[%c256, %c0_30] : memref<392x128xf32, #tpu.memory_space<vmem>>, vector<128x128xf32>
    %cst_31 = arith.constant dense<0.000000e+00> : vector<4x128xf32>
    %73 = tpu.matmul %71, %72, %cst_31 {dimension_numbers = #tpu.dot_dimension_numbers<[1], [0], [0], [1], [0, 0, 1, 1], [], []>} : vector<4x128xf32>, vector<128x128xf32>, vector<4x128xf32> -> vector<4x128xf32>
    %74 = vector.broadcast %4 : vector<1x128xf32> to vector<4x128xf32>
    %75 = arith.addf %73, %74 : vector<4x128xf32>
    %cst_32 = arith.constant 0.000000e+00 : f32
    %76 = vector.broadcast %cst_32 : f32 to vector<4x128xf32>
    %77 = arith.subf %76, %75 : vector<4x128xf32>
    %78 = math.exp %77 : vector<4x128xf32>
    %cst_33 = arith.constant 1.000000e+00 : f32
    %79 = vector.broadcast %cst_33 : f32 to vector<4x128xf32>
    %80 = arith.addf %79, %78 : vector<4x128xf32>
    %cst_34 = arith.constant 1.000000e+00 : f32
    %81 = vector.broadcast %cst_34 : f32 to vector<4x128xf32>
    %82 = arith.divf %81, %80 : vector<4x128xf32>
    %83 = tpu.iota {dimensions = array<i32: 1>} : vector<4x128xi32>
    %c3_i32 = arith.constant 3 : i32
    %84 = vector.broadcast %c3_i32 : i32 to vector<4x128xi32>
    %85 = arith.cmpi slt, %83, %84 : vector<4x128xi32>
    %86 = arith.select %85, %75, %82 : vector<4x128xi1>, vector<4x128xf32>
    %c6_i32 = arith.constant 6 : i32
    %87 = vector.broadcast %c6_i32 : i32 to vector<4x128xi32>
    %88 = arith.cmpi slt, %83, %87 : vector<4x128xi32>
    %cst_35 = arith.constant 2.000000e+00 : f32
    %89 = vector.broadcast %cst_35 : f32 to vector<4x128xf32>
    %90 = arith.mulf %86, %89 : vector<4x128xf32>
    %cst_36 = arith.constant 1.000000e+00 : f32
    %91 = vector.broadcast %cst_36 : f32 to vector<4x128xf32>
    %92 = arith.subf %90, %91 : vector<4x128xf32>
    %93 = arith.select %88, %92, %86 : vector<4x128xi1>, vector<4x128xf32>
    %c0_37 = arith.constant 0 : index
    %c0_38 = arith.constant 0 : index
    %94 = vector.load %arg2[%c0_37, %c0_38] : memref<4x128xf32, #tpu.memory_space<vmem>>, vector<4x128xf32>
    tpu.vector_store %arg2[%c0_37, %c0_38], %93 {strides = array<i32>} : memref<4x128xf32, #tpu.memory_space<vmem>>, vector<4x128xf32>,
    return
  }
}

</mosaic_0001>

<llo_original>
// kernel: tpu_custom_call.1
$region0: #{tpu_custom_call.1}
  #allocation0 [shape = 'u32[]', space=smem, size = 0x4, offset = 0x4, fixed_abs, tag = 'smem constant byte address 0x4 - core index']
  #allocation1 [shape = 'u32[144,128]{1,0:T(1,128)}', space=vmem, size = 0x12000, scoped, tag = 'internal scratch']
  %s0 = inlined_call_operand.hbm [shape: f32[4,64,128], index: 0, kind: input, shape index: {}]
  %s1 = inlined_call_operand.hbm [shape: f32[392,128], index: 1, kind: input, shape index: {}]
  %s2 = inlined_call_operand.hbm [shape: f32[4,128], index: 2, kind: output, shape index: {}]
  %s3 = sld [smem:[#allocation0]]
  $region26: #{tpu_custom_call.1} parent=0
    _
  %s5 = ssub.s32 1, %s3
  %s6 = scalar_select 0, %s5, %s3
  $region1: #{tpu_custom_call.1} parent=0
    #allocation2 [shape = 'u8[131072]{0}', space=vmem, size = 0x20000, scoped, tag = 'input window, operand 0, single buffered']
    #allocation3 [shape = 's32[1]{0}', space=sflag, size = 0x4, scoped, tag = 'scoped memory for tpu_custom_call.1']
    #allocation4 [shape = 's32[1]{0}', space=sflag, size = 0x4, scoped, tag = 'scoped memory for tpu_custom_call.1']
    #allocation5 [shape = 'u8[200704]{0}', space=vmem, size = 0x31000, scoped, tag = 'input window, operand 1, single buffered']
    #allocation6 [shape = 's32[1]{0}', space=sflag, size = 0x4, scoped, tag = 'scoped memory for tpu_custom_call.1']
    #allocation7 [shape = 'u8[2048]{0}', space=vmem, size = 0x800, scoped, tag = 'output window, operand 0, single buffered']
    %7 = vsyncpa [#allocation3], 0
    %8 = vsyncpa [#allocation6], 0
    %9 = vsyncpa [#allocation4], 0
    // Predicated region
    $region2: #{tpu_custom_call.1} parent=1 // pred_check
      _
    $region3: #{tpu_custom_call.1} parent=1 // pred_check_branch
      %11 = sbr.rel (0) target = $region5
    $region4: #{tpu_custom_call.1} parent=1 // pred_region
      %s13 = ssub.s32 4096, 4096
      %14 = vsyncadd [#allocation3], %s13
      %s15 = sshll.u32 [#allocation2], 4
      %s16 = int_to_ptr.vmem [resolvable:$true] %s15
      %21 = dma.hbm_to_vmem [thread:$0]  %s0, 4096, %s16, [#allocation3], 128, 128, 8
    $region5: #{tpu_custom_call.1} parent=1 // pred_fallthru
      _
    // Predicated region
    $region6: #{tpu_custom_call.1} parent=1 // pred_check
      _
    $region7: #{tpu_custom_call.1} parent=1 // pred_check_branch
      %23 = sbr.rel (0) target = $region9
    $region8: #{tpu_custom_call.1} parent=1 // pred_region
      %s25 = ssub.s32 6272, 6272
      %26 = vsyncadd [#allocation6], %s25
      %s27 = sshll.u32 [#allocation5], 4
      %s28 = int_to_ptr.vmem [resolvable:$true] %s27
      %33 = dma.hbm_to_vmem [thread:$0]  %s1, 6272, %s28, [#allocation6], 128, 128, 8
    $region9: #{tpu_custom_call.1} parent=1 // pred_fallthru
      _
    // Predicated region
    $region10: #{tpu_custom_call.1} parent=1 // pred_check
      _
    $region11: #{tpu_custom_call.1} parent=1 // pred_check_branch
      %35 = sbr.rel (0) target = $region13
    $region12: #{tpu_custom_call.1} parent=1 // pred_region
      %36 = dma.done [#allocation3], 4096
    $region13: #{tpu_custom_call.1} parent=1 // pred_fallthru
      _
    // Predicated region
    $region14: #{tpu_custom_call.1} parent=1 // pred_check
      _
    $region15: #{tpu_custom_call.1} parent=1 // pred_check_branch
      %38 = sbr.rel (0) target = $region17
    $region16: #{tpu_custom_call.1} parent=1 // pred_region
      %39 = dma.done [#allocation6], 6272
    $region17: #{tpu_custom_call.1} parent=1 // pred_fallthru
      _
    %v40 = vld [vmem:[#allocation5 + $0x180] sm:$0x1]
    %v41 = vld [vmem:[#allocation5 + $0x181] sm:$0x1]
    %v42 = vld [vmem:[#allocation5 + $0x182] sm:$0x1]
    %v43 = vld [vmem:[#allocation5 + $0x183] sm:$0x1]
    %v44 = vld [vmem:[#allocation5 + $0x184] sm:$0x1]
    %v45 = vld [vmem:[#allocation2] sm:$0xff]
    %v46 = vld [vmem:[#allocation2 + $0x8] sm:$0xff]
    %v47 = vld [vmem:[#allocation2 + $0x10] sm:$0xff]
    %v48 = vld [vmem:[#allocation2 + $0x18] sm:$0xff]
    %v49 = vld [vmem:[#allocation2 + $0x20] sm:$0xff]
    %v50 = vld [vmem:[#allocation2 + $0x28] sm:$0xff]
    %v51 = vld [vmem:[#allocation2 + $0x30] sm:$0xff]
    %v52 = vld [vmem:[#allocation2 + $0x38] sm:$0xff]
    %v53 = vld [vmem:[#allocation2 + $0x40] sm:$0xff]
    %v54 = vld [vmem:[#allocation2 + $0x48] sm:$0xff]
    %v55 = vld [vmem:[#allocation2 + $0x50] sm:$0xff]
    %v56 = vld [vmem:[#allocation2 + $0x58] sm:$0xff]
    %v57 = vld [vmem:[#allocation2 + $0x60] sm:$0xff]
    %v58 = vld [vmem:[#allocation2 + $0x68] sm:$0xff]
    %v59 = vld [vmem:[#allocation2 + $0x70] sm:$0xff]
    %v60 = vld [vmem:[#allocation2 + $0x78] sm:$0xff]
    %v61 = vld [vmem:[#allocation2 + $0x80] sm:$0xff]
    %v62 = vld [vmem:[#allocation2 + $0x88] sm:$0xff]
    %v63 = vld [vmem:[#allocation2 + $0x90] sm:$0xff]
    %v64 = vld [vmem:[#allocation2 + $0x98] sm:$0xff]
    %v65 = vld [vmem:[#allocation2 + $0xa0] sm:$0xff]
    %v66 = vld [vmem:[#allocation2 + $0xa8] sm:$0xff]
    %v67 = vld [vmem:[#allocation2 + $0xb0] sm:$0xff]
    %v68 = vld [vmem:[#allocation2 + $0xb8] sm:$0xff]
    %v69 = vld [vmem:[#allocation2 + $0xc0] sm:$0xff]
    %v70 = vld [vmem:[#allocation2 + $0xc8] sm:$0xff]
    %v71 = vld [vmem:[#allocation2 + $0xd0] sm:$0xff]
    %v72 = vld [vmem:[#allocation2 + $0xd8] sm:$0xff]
    %v73 = vld [vmem:[#allocation2 + $0xe0] sm:$0xff]
    %v74 = vld [vmem:[#allocation2 + $0xe8] sm:$0xff]
    %v75 = vld [vmem:[#allocation2 + $0xf0] sm:$0xff]
    %v76 = vld [vmem:[#allocation2 + $0xf8] sm:$0xff]
    %v77 = vlaneseq
    %v78 = vand.u32 %v77, 127
    %vm79 = vcmp.lt.s32.totalorder %v78, 64
    %v80 = vsel %vm79, 1, 0
    %vm81 = vcmp.eq.s32.totalorder %v80, 1
    %v82 = vsel %vm81, %v45, 0.0
    %v83 = vsel %vm81, %v46, 0.0
    %v84 = vsel %vm81, %v47, 0.0
    %v85 = vsel %vm81, %v48, 0.0
    %v86 = vsel %vm81, %v49, 0.0
    %v87 = vsel %vm81, %v50, 0.0
    %v88 = vsel %vm81, %v51, 0.0
    %v89 = vsel %vm81, %v52, 0.0
    %v90 = vsel %vm81, %v53, 0.0
    %v91 = vsel %vm81, %v54, 0.0
    %v92 = vsel %vm81, %v55, 0.0
    %v93 = vsel %vm81, %v56, 0.0
    %v94 = vsel %vm81, %v57, 0.0
    %v95 = vsel %vm81, %v58, 0.0
    %v96 = vsel %vm81, %v59, 0.0
    %v97 = vsel %vm81, %v60, 0.0
    %v98 = vsel %vm81, %v61, 0.0
    %v99 = vsel %vm81, %v62, 0.0
    %v100 = vsel %vm81, %v63, 0.0
    %v101 = vsel %vm81, %v64, 0.0
    %v102 = vsel %vm81, %v65, 0.0
    %v103 = vsel %vm81, %v66, 0.0
    %v104 = vsel %vm81, %v67, 0.0
    %v105 = vsel %vm81, %v68, 0.0
    %v106 = vsel %vm81, %v69, 0.0
    %v107 = vsel %vm81, %v70, 0.0
    %v108 = vsel %vm81, %v71, 0.0
    %v109 = vsel %vm81, %v72, 0.0
    %v110 = vsel %vm81, %v73, 0.0
    %v111 = vsel %vm81, %v74, 0.0
    %v112 = vsel %vm81, %v75, 0.0
    %v113 = vsel %vm81, %v76, 0.0
    %114 = vadd.xlane.f32.xlu0 %v82
    %v115 = vpop.xlane.xlu0 %114
    %116 = vadd.xlane.f32.xlu0 %v83
    %v117 = vpop.xlane.xlu0 %116
    %118 = vadd.xlane.f32.xlu0 %v84
    %v119 = vpop.xlane.xlu0 %118
    %120 = vadd.xlane.f32.xlu0 %v85
    %v121 = vpop.xlane.xlu0 %120
    %122 = vadd.xlane.f32.xlu0 %v86
    %v123 = vpop.xlane.xlu0 %122
    %124 = vadd.xlane.f32.xlu0 %v87
    %v125 = vpop.xlane.xlu0 %124
    %126 = vadd.xlane.f32.xlu0 %v88
    %v127 = vpop.xlane.xlu0 %126
    %128 = vadd.xlane.f32.xlu0 %v89
    %v129 = vpop.xlane.xlu0 %128
    %130 = vadd.xlane.f32.xlu0 %v90
    %v131 = vpop.xlane.xlu0 %130
    %132 = vadd.xlane.f32.xlu0 %v91
    %v133 = vpop.xlane.xlu0 %132
    %134 = vadd.xlane.f32.xlu0 %v92
    %v135 = vpop.xlane.xlu0 %134
    %136 = vadd.xlane.f32.xlu0 %v93
    %v137 = vpop.xlane.xlu0 %136
    %138 = vadd.xlane.f32.xlu0 %v94
    %v139 = vpop.xlane.xlu0 %138
    %140 = vadd.xlane.f32.xlu0 %v95
    %v141 = vpop.xlane.xlu0 %140
    %142 = vadd.xlane.f32.xlu0 %v96
    %v143 = vpop.xlane.xlu0 %142
    %144 = vadd.xlane.f32.xlu0 %v97
    %v145 = vpop.xlane.xlu0 %144
    %146 = vadd.xlane.f32.xlu0 %v98
    %v147 = vpop.xlane.xlu0 %146
    %148 = vadd.xlane.f32.xlu0 %v99
    %v149 = vpop.xlane.xlu0 %148
    %150 = vadd.xlane.f32.xlu0 %v100
    %v151 = vpop.xlane.xlu0 %150
    %152 = vadd.xlane.f32.xlu0 %v101
    %v153 = vpop.xlane.xlu0 %152
    %154 = vadd.xlane.f32.xlu0 %v102
    %v155 = vpop.xlane.xlu0 %154
    %156 = vadd.xlane.f32.xlu0 %v103
    %v157 = vpop.xlane.xlu0 %156
    %158 = vadd.xlane.f32.xlu0 %v104
    %v159 = vpop.xlane.xlu0 %158
    %160 = vadd.xlane.f32.xlu0 %v105
    %v161 = vpop.xlane.xlu0 %160
    %162 = vadd.xlane.f32.xlu0 %v106
    %v163 = vpop.xlane.xlu0 %162
    %164 = vadd.xlane.f32.xlu0 %v107
    %v165 = vpop.xlane.xlu0 %164
    %166 = vadd.xlane.f32.xlu0 %v108
    %v167 = vpop.xlane.xlu0 %166
    %168 = vadd.xlane.f32.xlu0 %v109
    %v169 = vpop.xlane.xlu0 %168
    %170 = vadd.xlane.f32.xlu0 %v110
    %v171 = vpop.xlane.xlu0 %170
    %172 = vadd.xlane.f32.xlu0 %v111
    %v173 = vpop.xlane.xlu0 %172
    %174 = vadd.xlane.f32.xlu0 %v112
    %v175 = vpop.xlane.xlu0 %174
    %176 = vadd.xlane.f32.xlu0 %v113
    %v177 = vpop.xlane.xlu0 %176
    %v178 = vsel %vm81, 0.0, %v45
    %v179 = vsel %vm81, 0.0, %v46
    %v180 = vsel %vm81, 0.0, %v47
    %v181 = vsel %vm81, 0.0, %v48
    %v182 = vsel %vm81, 0.0, %v49
    %v183 = vsel %vm81, 0.0, %v50
    %v184 = vsel %vm81, 0.0, %v51
    %v185 = vsel %vm81, 0.0, %v52
    %v186 = vsel %vm81, 0.0, %v53
    %v187 = vsel %vm81, 0.0, %v54
    %v188 = vsel %vm81, 0.0, %v55
    %v189 = vsel %vm81, 0.0, %v56
    %v190 = vsel %vm81, 0.0, %v57
    %v191 = vsel %vm81, 0.0, %v58
    %v192 = vsel %vm81, 0.0, %v59
    %v193 = vsel %vm81, 0.0, %v60
    %v194 = vsel %vm81, 0.0, %v61
    %v195 = vsel %vm81, 0.0, %v62
    %v196 = vsel %vm81, 0.0, %v63
    %v197 = vsel %vm81, 0.0, %v64
    %v198 = vsel %vm81, 0.0, %v65
    %v199 = vsel %vm81, 0.0, %v66
    %v200 = vsel %vm81, 0.0, %v67
    %v201 = vsel %vm81, 0.0, %v68
    %v202 = vsel %vm81, 0.0, %v69
    %v203 = vsel %vm81, 0.0, %v70
    %v204 = vsel %vm81, 0.0, %v71
    %v205 = vsel %vm81, 0.0, %v72
    %v206 = vsel %vm81, 0.0, %v73
    %v207 = vsel %vm81, 0.0, %v74
    %v208 = vsel %vm81, 0.0, %v75
    %v209 = vsel %vm81, 0.0, %v76
    %210 = vadd.xlane.f32.xlu0 %v178
    %v211 = vpop.xlane.xlu0 %210
    %212 = vadd.xlane.f32.xlu0 %v179
    %v213 = vpop.xlane.xlu0 %212
    %214 = vadd.xlane.f32.xlu0 %v180
    %v215 = vpop.xlane.xlu0 %214
    %216 = vadd.xlane.f32.xlu0 %v181
    %v217 = vpop.xlane.xlu0 %216
    %218 = vadd.xlane.f32.xlu0 %v182
    %v219 = vpop.xlane.xlu0 %218
    %220 = vadd.xlane.f32.xlu0 %v183
    %v221 = vpop.xlane.xlu0 %220
    %222 = vadd.xlane.f32.xlu0 %v184
    %v223 = vpop.xlane.xlu0 %222
    %224 = vadd.xlane.f32.xlu0 %v185
    %v225 = vpop.xlane.xlu0 %224
    %226 = vadd.xlane.f32.xlu0 %v186
    %v227 = vpop.xlane.xlu0 %226
    %228 = vadd.xlane.f32.xlu0 %v187
    %v229 = vpop.xlane.xlu0 %228
    %230 = vadd.xlane.f32.xlu0 %v188
    %v231 = vpop.xlane.xlu0 %230
    %232 = vadd.xlane.f32.xlu0 %v189
    %v233 = vpop.xlane.xlu0 %232
    %234 = vadd.xlane.f32.xlu0 %v190
    %v235 = vpop.xlane.xlu0 %234
    %236 = vadd.xlane.f32.xlu0 %v191
    %v237 = vpop.xlane.xlu0 %236
    %238 = vadd.xlane.f32.xlu0 %v192
    %v239 = vpop.xlane.xlu0 %238
    %240 = vadd.xlane.f32.xlu0 %v193
    %v241 = vpop.xlane.xlu0 %240
    %242 = vadd.xlane.f32.xlu0 %v194
    %v243 = vpop.xlane.xlu0 %242
    %244 = vadd.xlane.f32.xlu0 %v195
    %v245 = vpop.xlane.xlu0 %244
    %246 = vadd.xlane.f32.xlu0 %v196
    %v247 = vpop.xlane.xlu0 %246
    %248 = vadd.xlane.f32.xlu0 %v197
    %v249 = vpop.xlane.xlu0 %248
    %250 = vadd.xlane.f32.xlu0 %v198
    %v251 = vpop.xlane.xlu0 %250
    %252 = vadd.xlane.f32.xlu0 %v199
    %v253 = vpop.xlane.xlu0 %252
    %254 = vadd.xlane.f32.xlu0 %v200
    %v255 = vpop.xlane.xlu0 %254
    %256 = vadd.xlane.f32.xlu0 %v201
    %v257 = vpop.xlane.xlu0 %256
    %258 = vadd.xlane.f32.xlu0 %v202
    %v259 = vpop.xlane.xlu0 %258
    %260 = vadd.xlane.f32.xlu0 %v203
    %v261 = vpop.xlane.xlu0 %260
    %262 = vadd.xlane.f32.xlu0 %v204
    %v263 = vpop.xlane.xlu0 %262
    %264 = vadd.xlane.f32.xlu0 %v205
    %v265 = vpop.xlane.xlu0 %264
    %266 = vadd.xlane.f32.xlu0 %v206
    %v267 = vpop.xlane.xlu0 %266
    %268 = vadd.xlane.f32.xlu0 %v207
    %v269 = vpop.xlane.xlu0 %268
    %270 = vadd.xlane.f32.xlu0 %v208
    %v271 = vpop.xlane.xlu0 %270
    %272 = vadd.xlane.f32.xlu0 %v209
    %v273 = vpop.xlane.xlu0 %272
    %v274 = vld [vmem:[#allocation5] sm:$0xff]
    %v275 = vld [vmem:[#allocation5 + $0x8] sm:$0xff]
    %v276 = vld [vmem:[#allocation5 + $0x10] sm:$0xff]
    %v277 = vld [vmem:[#allocation5 + $0x18] sm:$0xff]
    %v278 = vld [vmem:[#allocation5 + $0x20] sm:$0xff]
    %v279 = vld [vmem:[#allocation5 + $0x28] sm:$0xff]
    %v280 = vld [vmem:[#allocation5 + $0x30] sm:$0xff]
    %v281 = vld [vmem:[#allocation5 + $0x38] sm:$0xff]
    %v282 = vld [vmem:[#allocation5 + $0x40] sm:$0xff]
    %v283 = vld [vmem:[#allocation5 + $0x48] sm:$0xff]
    %v284 = vld [vmem:[#allocation5 + $0x50] sm:$0xff]
    %v285 = vld [vmem:[#allocation5 + $0x58] sm:$0xff]
    %v286 = vld [vmem:[#allocation5 + $0x60] sm:$0xff]
    %v287 = vld [vmem:[#allocation5 + $0x68] sm:$0xff]
    %v288 = vld [vmem:[#allocation5 + $0x70] sm:$0xff]
    %v289 = vld [vmem:[#allocation5 + $0x78] sm:$0xff]
    %v322 = vlaneseq
    %v323 = vshrl.u32 %v322, 7
    %v324 = vsub.s32 %v78, %v323
    %v325 = vrot.slane %v211, %v324
    %v326 = vadd.s32 %v78, 4294967288
    %v327 = vlaneseq
    %v328 = vshrl.u32 %v327, 7
    %v329 = vsub.s32 %v326, %v328
    %v330 = vrot.slane %v213, %v329
    %vm331 = vcmask 130112
    %v332 = vsel %vm331, %v330, %v325
    %v333 = vadd.s32 %v78, 4294967280
    %v334 = vlaneseq
    %v335 = vshrl.u32 %v334, 7
    %v336 = vsub.s32 %v333, %v335
    %v337 = vrot.slane %v215, %v336
    %vm338 = vcmask 195712
    %v339 = vsel %vm338, %v337, %v332
    %v340 = vadd.s32 %v78, 4294967272
    %v341 = vlaneseq
    %v342 = vshrl.u32 %v341, 7
    %v343 = vsub.s32 %v340, %v342
    %v344 = vrot.slane %v217, %v343
    %vm345 = vcmask 261312
    %v346 = vsel %vm345, %v344, %v339
    %v347 = vadd.s32 %v78, 4294967264
    %v348 = vlaneseq
    %v349 = vshrl.u32 %v348, 7
    %v350 = vsub.s32 %v347, %v349
    %v351 = vrot.slane %v219, %v350
    %vm352 = vcmask 326912
    %v353 = vsel %vm352, %v351, %v346
    %v354 = vadd.s32 %v78, 4294967256
    %v355 = vlaneseq
    %v356 = vshrl.u32 %v355, 7
    %v357 = vsub.s32 %v354, %v356
    %v358 = vrot.slane %v221, %v357
    %vm359 = vcmask 392512
    %v360 = vsel %vm359, %v358, %v353
    %v361 = vadd.s32 %v78, 4294967248
    %v362 = vlaneseq
    %v363 = vshrl.u32 %v362, 7
    %v364 = vsub.s32 %v361, %v363
    %v365 = vrot.slane %v223, %v364
    %vm366 = vcmask 458112
    %v367 = vsel %vm366, %v365, %v360
    %v368 = vadd.s32 %v78, 4294967240
    %v369 = vlaneseq
    %v370 = vshrl.u32 %v369, 7
    %v371 = vsub.s32 %v368, %v370
    %v372 = vrot.slane %v225, %v371
    %vm373 = vcmask 523712
    %v374 = vsel %vm373, %v372, %v367
    %v375 = vlaneseq
    %v376 = vshrl.u32 %v375, 7
    %v377 = vsub.s32 %v78, %v376
    %v378 = vrot.slane %v227, %v377
    %v379 = vlaneseq
    %v380 = vshrl.u32 %v379, 7
    %v381 = vsub.s32 %v326, %v380
    %v382 = vrot.slane %v229, %v381
    %v383 = vsel %vm331, %v382, %v378
    %v384 = vlaneseq
    %v385 = vshrl.u32 %v384, 7
    %v386 = vsub.s32 %v333, %v385
    %v387 = vrot.slane %v231, %v386
    %v388 = vsel %vm338, %v387, %v383
    %v389 = vlaneseq
    %v390 = vshrl.u32 %v389, 7
    %v391 = vsub.s32 %v340, %v390
    %v392 = vrot.slane %v233, %v391
    %v393 = vsel %vm345, %v392, %v388
    %v394 = vlaneseq
    %v395 = vshrl.u32 %v394, 7
    %v396 = vsub.s32 %v347, %v395
    %v397 = vrot.slane %v235, %v396
    %v398 = vsel %vm352, %v397, %v393
    %v399 = vlaneseq
    %v400 = vshrl.u32 %v399, 7
    %v401 = vsub.s32 %v354, %v400
    %v402 = vrot.slane %v237, %v401
    %v403 = vsel %vm359, %v402, %v398
    %v404 = vlaneseq
    %v405 = vshrl.u32 %v404, 7
    %v406 = vsub.s32 %v361, %v405
    %v407 = vrot.slane %v239, %v406
    %v408 = vsel %vm366, %v407, %v403
    %v409 = vlaneseq
    %v410 = vshrl.u32 %v409, 7
    %v411 = vsub.s32 %v368, %v410
    %v412 = vrot.slane %v241, %v411
    %v413 = vsel %vm373, %v412, %v408
    %v414 = vlaneseq
    %v415 = vshrl.u32 %v414, 7
    %v416 = vsub.s32 %v78, %v415
    %v417 = vrot.slane %v243, %v416
    %v418 = vlaneseq
    %v419 = vshrl.u32 %v418, 7
    %v420 = vsub.s32 %v326, %v419
    %v421 = vrot.slane %v245, %v420
    %v422 = vsel %vm331, %v421, %v417
    %v423 = vlaneseq
    %v424 = vshrl.u32 %v423, 7
    %v425 = vsub.s32 %v333, %v424
    %v426 = vrot.slane %v247, %v425
    %v427 = vsel %vm338, %v426, %v422
    %v428 = vlaneseq
    %v429 = vshrl.u32 %v428, 7
    %v430 = vsub.s32 %v340, %v429
    %v431 = vrot.slane %v249, %v430
    %v432 = vsel %vm345, %v431, %v427
    %v433 = vlaneseq
    %v434 = vshrl.u32 %v433, 7
    %v435 = vsub.s32 %v347, %v434
    %v436 = vrot.slane %v251, %v435
    %v437 = vsel %vm352, %v436, %v432
    %v438 = vlaneseq
    %v439 = vshrl.u32 %v438, 7
    %v440 = vsub.s32 %v354, %v439
    %v441 = vrot.slane %v253, %v440
    %v442 = vsel %vm359, %v441, %v437
    %v443 = vlaneseq
    %v444 = vshrl.u32 %v443, 7
    %v445 = vsub.s32 %v361, %v444
    %v446 = vrot.slane %v255, %v445
    %v447 = vsel %vm366, %v446, %v442
    %v448 = vlaneseq
    %v449 = vshrl.u32 %v448, 7
    %v450 = vsub.s32 %v368, %v449
    %v451 = vrot.slane %v257, %v450
    %v452 = vsel %vm373, %v451, %v447
    %v453 = vlaneseq
    %v454 = vshrl.u32 %v453, 7
    %v455 = vsub.s32 %v78, %v454
    %v456 = vrot.slane %v259, %v455
    %v457 = vlaneseq
    %v458 = vshrl.u32 %v457, 7
    %v459 = vsub.s32 %v326, %v458
    %v460 = vrot.slane %v261, %v459
    %v461 = vsel %vm331, %v460, %v456
    %v462 = vlaneseq
    %v463 = vshrl.u32 %v462, 7
    %v464 = vsub.s32 %v333, %v463
    %v465 = vrot.slane %v263, %v464
    %v466 = vsel %vm338, %v465, %v461
    %v467 = vlaneseq
    %v468 = vshrl.u32 %v467, 7
    %v469 = vsub.s32 %v340, %v468
    %v470 = vrot.slane %v265, %v469
    %v471 = vsel %vm345, %v470, %v466
    %v472 = vlaneseq
    %v473 = vshrl.u32 %v472, 7
    %v474 = vsub.s32 %v347, %v473
    %v475 = vrot.slane %v267, %v474
    %v476 = vsel %vm352, %v475, %v471
    %v477 = vlaneseq
    %v478 = vshrl.u32 %v477, 7
    %v479 = vsub.s32 %v354, %v478
    %v480 = vrot.slane %v269, %v479
    %v481 = vsel %vm359, %v480, %v476
    %v482 = vlaneseq
    %v483 = vshrl.u32 %v482, 7
    %v484 = vsub.s32 %v361, %v483
    %v485 = vrot.slane %v271, %v484
    %v486 = vsel %vm366, %v485, %v481
    %v487 = vlaneseq
    %v488 = vshrl.u32 %v487, 7
    %v489 = vsub.s32 %v368, %v488
    %v490 = vrot.slane %v273, %v489
    %v491 = vsel %vm373, %v490, %v486
    %vm492 = vcmask 1041409
    %v493 = vsel %vm492, %v413, %v374
    %vm494 = vcmask 1042434
    %v495 = vsel %vm494, %v452, %v493
    %vm496 = vcmask 1043459
    %v497 = vsel %vm496, %v491, %v495
    %vm498 = vcmask 523264
    %v499 = vsel %vm498, %v497, 0
    %501 = vmatprep.subr.mxu0 0.0
    %502 = vmatpush1.msra.mxu0 %v282
    %503 = vmatprep.subr.mxu0 0.0
    %504 = vmatpush1.msra.mxu0 %v283
    %505 = vmatprep.subr.mxu0 0.0
    %506 = vmatpush1.msra.mxu0 %v284
    %507 = vmatprep.subr.mxu0 0.0
    %508 = vmatpush1.msra.mxu0 %v285
    %509 = vmatprep.subr.mxu0 0.0
    %510 = vmatpush1.msra.mxu0 %v286
    %511 = vmatprep.subr.mxu0 0.0
    %512 = vmatpush1.msra.mxu0 %v287
    %513 = vmatprep.subr.mxu0 0.0
    %514 = vmatpush1.msra.mxu0 %v288
    %515 = vmatprep.subr.mxu0 0.0
    %516 = vmatpush1.msra.mxu0 %v289
    %517 = vmatprep.subr.mxu0 0.0
    %518 = vmatpush1.msra.mxu0 0.0
    %519 = vmatprep.subr.mxu0 0.0
    %520 = vmatpush1.msra.mxu0 0.0
    %521 = vmatprep.subr.mxu0 0.0
    %522 = vmatpush1.msra.mxu0 0.0
    %523 = vmatprep.subr.mxu0 0.0
    %524 = vmatpush1.msra.mxu0 0.0
    %525 = vmatprep.subr.mxu0 0.0
    %526 = vmatpush1.msra.mxu0 0.0
    %527 = vmatprep.subr.mxu0 0.0
    %528 = vmatpush1.msra.mxu0 0.0
    %529 = vmatprep.subr.mxu0 0.0
    %530 = vmatpush1.msra.mxu0 0.0
    %531 = vmatprep.subr.mxu0 0.0
    %532 = vmatpush1.msra.mxu0 0.0
    %533 = vmatprep.subr.mxu0 0.0
    %534 = vmatpush1.msra.mxu0 0.0
    %535 = vmatprep.subr.mxu0 0.0
    %536 = vmatpush1.msra.mxu0 0.0
    %537 = vmatprep.subr.mxu0 0.0
    %538 = vmatpush1.msra.mxu0 0.0
    %539 = vmatprep.subr.mxu0 0.0
    %540 = vmatpush1.msra.mxu0 0.0
    %541 = vmatprep.subr.mxu0 0.0
    %542 = vmatpush1.msra.mxu0 0.0
    %543 = vmatprep.subr.mxu0 0.0
    %544 = vmatpush1.msra.mxu0 0.0
    %545 = vmatprep.subr.mxu0 0.0
    %546 = vmatpush1.msra.mxu0 0.0
    %547 = vmatprep.subr.mxu0 0.0
    %548 = vmatpush1.msra.mxu0 0.0
    %549 = vmatprep.subr.mxu0 0.0
    %550 = vmatpush1.msra.mxu0 0.0
    %551 = vmatprep.subr.mxu0 0.0
    %552 = vmatpush1.msra.mxu0 0.0
    %553 = vmatprep.subr.mxu0 0.0
    %554 = vmatpush1.msra.mxu0 0.0
    %555 = vmatprep.subr.mxu0 0.0
    %556 = vmatpush1.msra.mxu0 0.0
    %557 = vmatprep.subr.mxu0 0.0
    %558 = vmatpush1.msra.mxu0 0.0
    %559 = vmatprep.subr.mxu0 0.0
    %560 = vmatpush1.msra.mxu0 0.0
    %561 = vmatprep.subr.mxu0 0.0
    %562 = vmatpush1.msra.mxu0 0.0
    %563 = vmatprep.subr.mxu0 0.0
    %564 = vmatpush1.msra.mxu0 0.0
    %565 = vmatprep.mubr.f32.mxu0 0.0
    %566 = vmatmul.mubr.f32.gmra.mrb[0].mxu0 %v499
    %v567 = vpop.f32.mrb[0].mxu0
    %v568 = vadd.f32 0.0, %v567
    %v569 = vpop.f32.mrb[0].mxu0
    %570 = vdwg.mxu0
    %v603 = vlaneseq
    %v604 = vshrl.u32 %v603, 7
    %v605 = vsub.s32 %v78, %v604
    %v606 = vrot.slane %v115, %v605
    %v607 = vlaneseq
    %v608 = vshrl.u32 %v607, 7
    %v609 = vsub.s32 %v326, %v608
    %v610 = vrot.slane %v117, %v609
    %v611 = vsel %vm331, %v610, %v606
    %v612 = vlaneseq
    %v613 = vshrl.u32 %v612, 7
    %v614 = vsub.s32 %v333, %v613
    %v615 = vrot.slane %v119, %v614
    %v616 = vsel %vm338, %v615, %v611
    %v617 = vlaneseq
    %v618 = vshrl.u32 %v617, 7
    %v619 = vsub.s32 %v340, %v618
    %v620 = vrot.slane %v121, %v619
    %v621 = vsel %vm345, %v620, %v616
    %v622 = vlaneseq
    %v623 = vshrl.u32 %v622, 7
    %v624 = vsub.s32 %v347, %v623
    %v625 = vrot.slane %v123, %v624
    %v626 = vsel %vm352, %v625, %v621
    %v627 = vlaneseq
    %v628 = vshrl.u32 %v627, 7
    %v629 = vsub.s32 %v354, %v628
    %v630 = vrot.slane %v125, %v629
    %v631 = vsel %vm359, %v630, %v626
    %v632 = vlaneseq
    %v633 = vshrl.u32 %v632, 7
    %v634 = vsub.s32 %v361, %v633
    %v635 = vrot.slane %v127, %v634
    %v636 = vsel %vm366, %v635, %v631
    %v637 = vlaneseq
    %v638 = vshrl.u32 %v637, 7
    %v639 = vsub.s32 %v368, %v638
    %v640 = vrot.slane %v129, %v639
    %v641 = vsel %vm373, %v640, %v636
    %v642 = vlaneseq
    %v643 = vshrl.u32 %v642, 7
    %v644 = vsub.s32 %v78, %v643
    %v645 = vrot.slane %v131, %v644
    %v646 = vlaneseq
    %v647 = vshrl.u32 %v646, 7
    %v648 = vsub.s32 %v326, %v647
    %v649 = vrot.slane %v133, %v648
    %v650 = vsel %vm331, %v649, %v645
    %v651 = vlaneseq
    %v652 = vshrl.u32 %v651, 7
    %v653 = vsub.s32 %v333, %v652
    %v654 = vrot.slane %v135, %v653
    %v655 = vsel %vm338, %v654, %v650
    %v656 = vlaneseq
    %v657 = vshrl.u32 %v656, 7
    %v658 = vsub.s32 %v340, %v657
    %v659 = vrot.slane %v137, %v658
    %v660 = vsel %vm345, %v659, %v655
    %v661 = vlaneseq
    %v662 = vshrl.u32 %v661, 7
    %v663 = vsub.s32 %v347, %v662
    %v664 = vrot.slane %v139, %v663
    %v665 = vsel %vm352, %v664, %v660
    %v666 = vlaneseq
    %v667 = vshrl.u32 %v666, 7
    %v668 = vsub.s32 %v354, %v667
    %v669 = vrot.slane %v141, %v668
    %v670 = vsel %vm359, %v669, %v665
    %v671 = vlaneseq
    %v672 = vshrl.u32 %v671, 7
    %v673 = vsub.s32 %v361, %v672
    %v674 = vrot.slane %v143, %v673
    %v675 = vsel %vm366, %v674, %v670
    %v676 = vlaneseq
    %v677 = vshrl.u32 %v676, 7
    %v678 = vsub.s32 %v368, %v677
    %v679 = vrot.slane %v145, %v678
    %v680 = vsel %vm373, %v679, %v675
    %v681 = vlaneseq
    %v682 = vshrl.u32 %v681, 7
    %v683 = vsub.s32 %v78, %v682
    %v684 = vrot.slane %v147, %v683
    %v685 = vlaneseq
    %v686 = vshrl.u32 %v685, 7
    %v687 = vsub.s32 %v326, %v686
    %v688 = vrot.slane %v149, %v687
    %v689 = vsel %vm331, %v688, %v684
    %v690 = vlaneseq
    %v691 = vshrl.u32 %v690, 7
    %v692 = vsub.s32 %v333, %v691
    %v693 = vrot.slane %v151, %v692
    %v694 = vsel %vm338, %v693, %v689
    %v695 = vlaneseq
    %v696 = vshrl.u32 %v695, 7
    %v697 = vsub.s32 %v340, %v696
    %v698 = vrot.slane %v153, %v697
    %v699 = vsel %vm345, %v698, %v694
    %v700 = vlaneseq
    %v701 = vshrl.u32 %v700, 7
    %v702 = vsub.s32 %v347, %v701
    %v703 = vrot.slane %v155, %v702
    %v704 = vsel %vm352, %v703, %v699
    %v705 = vlaneseq
    %v706 = vshrl.u32 %v705, 7
    %v707 = vsub.s32 %v354, %v706
    %v708 = vrot.slane %v157, %v707
    %v709 = vsel %vm359, %v708, %v704
    %v710 = vlaneseq
    %v711 = vshrl.u32 %v710, 7
    %v712 = vsub.s32 %v361, %v711
    %v713 = vrot.slane %v159, %v712
    %v714 = vsel %vm366, %v713, %v709
    %v715 = vlaneseq
    %v716 = vshrl.u32 %v715, 7
    %v717 = vsub.s32 %v368, %v716
    %v718 = vrot.slane %v161, %v717
    %v719 = vsel %vm373, %v718, %v714
    %v720 = vlaneseq
    %v721 = vshrl.u32 %v720, 7
    %v722 = vsub.s32 %v78, %v721
    %v723 = vrot.slane %v163, %v722
    %v724 = vlaneseq
    %v725 = vshrl.u32 %v724, 7
    %v726 = vsub.s32 %v326, %v725
    %v727 = vrot.slane %v165, %v726
    %v728 = vsel %vm331, %v727, %v723
    %v729 = vlaneseq
    %v730 = vshrl.u32 %v729, 7
    %v731 = vsub.s32 %v333, %v730
    %v732 = vrot.slane %v167, %v731
    %v733 = vsel %vm338, %v732, %v728
    %v734 = vlaneseq
    %v735 = vshrl.u32 %v734, 7
    %v736 = vsub.s32 %v340, %v735
    %v737 = vrot.slane %v169, %v736
    %v738 = vsel %vm345, %v737, %v733
    %v739 = vlaneseq
    %v740 = vshrl.u32 %v739, 7
    %v741 = vsub.s32 %v347, %v740
    %v742 = vrot.slane %v171, %v741
    %v743 = vsel %vm352, %v742, %v738
    %v744 = vlaneseq
    %v745 = vshrl.u32 %v744, 7
    %v746 = vsub.s32 %v354, %v745
    %v747 = vrot.slane %v173, %v746
    %v748 = vsel %vm359, %v747, %v743
    %v749 = vlaneseq
    %v750 = vshrl.u32 %v749, 7
    %v751 = vsub.s32 %v361, %v750
    %v752 = vrot.slane %v175, %v751
    %v753 = vsel %vm366, %v752, %v748
    %v754 = vlaneseq
    %v755 = vshrl.u32 %v754, 7
    %v756 = vsub.s32 %v368, %v755
    %v757 = vrot.slane %v177, %v756
    %v758 = vsel %vm373, %v757, %v753
    %v759 = vsel %vm492, %v680, %v641
    %v760 = vsel %vm494, %v719, %v759
    %v761 = vsel %vm496, %v758, %v760
    %v762 = vsel %vm498, %v761, 0
    %764 = vmatprep.subr.mxu0 0.0
    %765 = vmatpush1.msra.mxu0 %v274
    %766 = vmatprep.subr.mxu0 0.0
    %767 = vmatpush1.msra.mxu0 %v275
    %768 = vmatprep.subr.mxu0 0.0
    %769 = vmatpush1.msra.mxu0 %v276
    %770 = vmatprep.subr.mxu0 0.0
    %771 = vmatpush1.msra.mxu0 %v277
    %772 = vmatprep.subr.mxu0 0.0
    %773 = vmatpush1.msra.mxu0 %v278
    %774 = vmatprep.subr.mxu0 0.0
    %775 = vmatpush1.msra.mxu0 %v279
    %776 = vmatprep.subr.mxu0 0.0
    %777 = vmatpush1.msra.mxu0 %v280
    %778 = vmatprep.subr.mxu0 0.0
    %779 = vmatpush1.msra.mxu0 %v281
    %780 = vmatprep.subr.mxu0 0.0
    %781 = vmatpush1.msra.mxu0 0.0
    %782 = vmatprep.subr.mxu0 0.0
    %783 = vmatpush1.msra.mxu0 0.0
    %784 = vmatprep.subr.mxu0 0.0
    %785 = vmatpush1.msra.mxu0 0.0
    %786 = vmatprep.subr.mxu0 0.0
    %787 = vmatpush1.msra.mxu0 0.0
    %788 = vmatprep.subr.mxu0 0.0
    %789 = vmatpush1.msra.mxu0 0.0
    %790 = vmatprep.subr.mxu0 0.0
    %791 = vmatpush1.msra.mxu0 0.0
    %792 = vmatprep.subr.mxu0 0.0
    %793 = vmatpush1.msra.mxu0 0.0
    %794 = vmatprep.subr.mxu0 0.0
    %795 = vmatpush1.msra.mxu0 0.0
    %796 = vmatprep.subr.mxu0 0.0
    %797 = vmatpush1.msra.mxu0 0.0
    %798 = vmatprep.subr.mxu0 0.0
    %799 = vmatpush1.msra.mxu0 0.0
    %800 = vmatprep.subr.mxu0 0.0
    %801 = vmatpush1.msra.mxu0 0.0
    %802 = vmatprep.subr.mxu0 0.0
    %803 = vmatpush1.msra.mxu0 0.0
    %804 = vmatprep.subr.mxu0 0.0
    %805 = vmatpush1.msra.mxu0 0.0
    %806 = vmatprep.subr.mxu0 0.0
    %807 = vmatpush1.msra.mxu0 0.0
    %808 = vmatprep.subr.mxu0 0.0
    %809 = vmatpush1.msra.mxu0 0.0
    %810 = vmatprep.subr.mxu0 0.0
    %811 = vmatpush1.msra.mxu0 0.0
    %812 = vmatprep.subr.mxu0 0.0
    %813 = vmatpush1.msra.mxu0 0.0
    %814 = vmatprep.subr.mxu0 0.0
    %815 = vmatpush1.msra.mxu0 0.0
    %816 = vmatprep.subr.mxu0 0.0
    %817 = vmatpush1.msra.mxu0 0.0
    %818 = vmatprep.subr.mxu0 0.0
    %819 = vmatpush1.msra.mxu0 0.0
    %820 = vmatprep.subr.mxu0 0.0
    %821 = vmatpush1.msra.mxu0 0.0
    %822 = vmatprep.subr.mxu0 0.0
    %823 = vmatpush1.msra.mxu0 0.0
    %824 = vmatprep.subr.mxu0 0.0
    %825 = vmatpush1.msra.mxu0 0.0
    %826 = vmatprep.subr.mxu0 0.0
    %827 = vmatpush1.msra.mxu0 0.0
    %828 = vmatprep.mubr.f32.mxu0 0.0
    %829 = vmatmul.mubr.f32.gmra.mrb[0].mxu0 %v762
    %v830 = vpop.f32.mrb[0].mxu0
    %v831 = vadd.f32 %v568, %v830
    %v832 = vpop.f32.mrb[0].mxu0
    %833 = vdwg.mxu0
    %vm834 = vcmask 1043456
    %v835 = vsel %vm834, %v831, 0.0
    %v836 = vrot.slane %v835, 4
    %v837 = vadd.f32 %v835, %v836
    %v838 = vrot.slane %v837, 2
    %v839 = vadd.f32 %v837, %v838
    %v840 = vrot.slane %v839, 1
    %v841 = vadd.f32 %v839, %v840
    %v842 = vrcp.pop 4.0
    %v843 = vmul.f32 %v841, %v842
    %v844 = vsub.f32 %v831, %v843
    %v845 = vmul.f32 %v844, %v844
    %v846 = vsel %vm834, %v845, 0.0
    %v847 = vrot.slane %v846, 4
    %v848 = vadd.f32 %v846, %v847
    %v849 = vrot.slane %v848, 2
    %v850 = vadd.f32 %v848, %v849
    %v851 = vrot.slane %v850, 1
    %v852 = vadd.f32 %v850, %v851
    %v853 = vmul.f32 %v852, %v842
    %v854 = vlaneseq
    %v855 = vshrl.u32 %v854, 7
    %v856 = vsub.s32 0, %v855
    %v857 = vrot.slane %v40, %v856
    %v858 = vmul.f32 %v857, %v844
    %v859 = vadd.f32 %v853, 1e-05
    %v860 = vrsqrt.pop %v859
    %v861 = vmul.f32 %v858, %v860
    %v862 = vlaneseq
    %v863 = vshrl.u32 %v862, 7
    %v864 = vsub.s32 0, %v863
    %v865 = vrot.slane %v41, %v864
    %v866 = vadd.f32 %v861, %v865
    %v867 = vmax.f32 %v866, 0.0
    %v868 = vld [vmem:[#allocation5 + $0x80] sm:$0xff]
    %v869 = vld [vmem:[#allocation5 + $0x88] sm:$0xff]
    %v870 = vld [vmem:[#allocation5 + $0x90] sm:$0xff]
    %v871 = vld [vmem:[#allocation5 + $0x98] sm:$0xff]
    %v872 = vld [vmem:[#allocation5 + $0xa0] sm:$0xff]
    %v873 = vld [vmem:[#allocation5 + $0xa8] sm:$0xff]
    %v874 = vld [vmem:[#allocation5 + $0xb0] sm:$0xff]
    %v875 = vld [vmem:[#allocation5 + $0xb8] sm:$0xff]
    %v876 = vld [vmem:[#allocation5 + $0xc0] sm:$0xff]
    %v877 = vld [vmem:[#allocation5 + $0xc8] sm:$0xff]
    %v878 = vld [vmem:[#allocation5 + $0xd0] sm:$0xff]
    %v879 = vld [vmem:[#allocation5 + $0xd8] sm:$0xff]
    %v880 = vld [vmem:[#allocation5 + $0xe0] sm:$0xff]
    %v881 = vld [vmem:[#allocation5 + $0xe8] sm:$0xff]
    %v882 = vld [vmem:[#allocation5 + $0xf0] sm:$0xff]
    %v883 = vld [vmem:[#allocation5 + $0xf8] sm:$0xff]
    %884 = vmatprep.subr.mxu0 0.0
    %885 = vmatpush1.msra.mxu0 %v868
    %886 = vmatprep.subr.mxu0 0.0
    %887 = vmatpush1.msra.mxu0 %v869
    %888 = vmatprep.subr.mxu0 0.0
    %889 = vmatpush1.msra.mxu0 %v870
    %890 = vmatprep.subr.mxu0 0.0
    %891 = vmatpush1.msra.mxu0 %v871
    %892 = vmatprep.subr.mxu0 0.0
    %893 = vmatpush1.msra.mxu0 %v872
    %894 = vmatprep.subr.mxu0 0.0
    %895 = vmatpush1.msra.mxu0 %v873
    %896 = vmatprep.subr.mxu0 0.0
    %897 = vmatpush1.msra.mxu0 %v874
    %898 = vmatprep.subr.mxu0 0.0
    %899 = vmatpush1.msra.mxu0 %v875
    %900 = vmatprep.subr.mxu0 0.0
    %901 = vmatpush1.msra.mxu0 %v876
    %902 = vmatprep.subr.mxu0 0.0
    %903 = vmatpush1.msra.mxu0 %v877
    %904 = vmatprep.subr.mxu0 0.0
    %905 = vmatpush1.msra.mxu0 %v878
    %906 = vmatprep.subr.mxu0 0.0
    %907 = vmatpush1.msra.mxu0 %v879
    %908 = vmatprep.subr.mxu0 0.0
    %909 = vmatpush1.msra.mxu0 %v880
    %910 = vmatprep.subr.mxu0 0.0
    %911 = vmatpush1.msra.mxu0 %v881
    %912 = vmatprep.subr.mxu0 0.0
    %913 = vmatpush1.msra.mxu0 %v882
    %914 = vmatprep.subr.mxu0 0.0
    %915 = vmatpush1.msra.mxu0 %v883
    %916 = vmatprep.subr.mxu0 0.0
    %917 = vmatpush1.msra.mxu0 0.0
    %918 = vmatprep.subr.mxu0 0.0
    %919 = vmatpush1.msra.mxu0 0.0
    %920 = vmatprep.subr.mxu0 0.0
    %921 = vmatpush1.msra.mxu0 0.0
    %922 = vmatprep.subr.mxu0 0.0
    %923 = vmatpush1.msra.mxu0 0.0
    %924 = vmatprep.subr.mxu0 0.0
    %925 = vmatpush1.msra.mxu0 0.0
    %926 = vmatprep.subr.mxu0 0.0
    %927 = vmatpush1.msra.mxu0 0.0
    %928 = vmatprep.subr.mxu0 0.0
    %929 = vmatpush1.msra.mxu0 0.0
    %930 = vmatprep.subr.mxu0 0.0
    %931 = vmatpush1.msra.mxu0 0.0
    %932 = vmatprep.subr.mxu0 0.0
    %933 = vmatpush1.msra.mxu0 0.0
    %934 = vmatprep.subr.mxu0 0.0
    %935 = vmatpush1.msra.mxu0 0.0
    %936 = vmatprep.subr.mxu0 0.0
    %937 = vmatpush1.msra.mxu0 0.0
    %938 = vmatprep.subr.mxu0 0.0
    %939 = vmatpush1.msra.mxu0 0.0
    %940 = vmatprep.subr.mxu0 0.0
    %941 = vmatpush1.msra.mxu0 0.0
    %942 = vmatprep.subr.mxu0 0.0
    %943 = vmatpush1.msra.mxu0 0.0
    %944 = vmatprep.subr.mxu0 0.0
    %945 = vmatpush1.msra.mxu0 0.0
    %946 = vmatprep.subr.mxu0 0.0
    %947 = vmatpush1.msra.mxu0 0.0
    %948 = vmatprep.mubr.f32.mxu0 0.0
    %949 = vmatmul.mubr.f32.gmra.mrb[0].mxu0 %v867
    %v950 = vpop.f32.mrb[0].mxu0
    %v951 = vadd.f32 0.0, %v950
    %v952 = vpop.f32.mrb[0].mxu0
    %953 = vdwg.mxu0
    %v954 = vsel %vm834, %v951, 0.0
    %v955 = vrot.slane %v954, 4
    %v956 = vadd.f32 %v954, %v955
    %v957 = vrot.slane %v956, 2
    %v958 = vadd.f32 %v956, %v957
    %v959 = vrot.slane %v958, 1
    %v960 = vadd.f32 %v958, %v959
    %v961 = vmul.f32 %v960, %v842
    %v962 = vsub.f32 %v951, %v961
    %v963 = vmul.f32 %v962, %v962
    %v964 = vsel %vm834, %v963, 0.0
    %v965 = vrot.slane %v964, 4
    %v966 = vadd.f32 %v964, %v965
    %v967 = vrot.slane %v966, 2
    %v968 = vadd.f32 %v966, %v967
    %v969 = vrot.slane %v968, 1
    %v970 = vadd.f32 %v968, %v969
    %v971 = vmul.f32 %v970, %v842
    %v972 = vlaneseq
    %v973 = vshrl.u32 %v972, 7
    %v974 = vsub.s32 0, %v973
    %v975 = vrot.slane %v42, %v974
    %v976 = vmul.f32 %v975, %v962
    %v977 = vadd.f32 %v971, 1e-05
    %v978 = vrsqrt.pop %v977
    %v979 = vmul.f32 %v976, %v978
    %v980 = vlaneseq
    %v981 = vshrl.u32 %v980, 7
    %v982 = vsub.s32 0, %v981
    %v983 = vrot.slane %v43, %v982
    %v984 = vadd.f32 %v979, %v983
    %v985 = vmax.f32 %v984, 0.0
    %v986 = vld [vmem:[#allocation5 + $0x100] sm:$0xff]
    %v987 = vld [vmem:[#allocation5 + $0x108] sm:$0xff]
    %v988 = vld [vmem:[#allocation5 + $0x110] sm:$0xff]
    %v989 = vld [vmem:[#allocation5 + $0x118] sm:$0xff]
    %v990 = vld [vmem:[#allocation5 + $0x120] sm:$0xff]
    %v991 = vld [vmem:[#allocation5 + $0x128] sm:$0xff]
    %v992 = vld [vmem:[#allocation5 + $0x130] sm:$0xff]
    %v993 = vld [vmem:[#allocation5 + $0x138] sm:$0xff]
    %v994 = vld [vmem:[#allocation5 + $0x140] sm:$0xff]
    %v995 = vld [vmem:[#allocation5 + $0x148] sm:$0xff]
    %v996 = vld [vmem:[#allocation5 + $0x150] sm:$0xff]
    %v997 = vld [vmem:[#allocation5 + $0x158] sm:$0xff]
    %v998 = vld [vmem:[#allocation5 + $0x160] sm:$0xff]
    %v999 = vld [vmem:[#allocation5 + $0x168] sm:$0xff]
    %v1000 = vld [vmem:[#allocation5 + $0x170] sm:$0xff]
    %v1001 = vld [vmem:[#allocation5 + $0x178] sm:$0xff]
    %v1002 = vlaneseq
    %v1003 = vshrl.u32 %v1002, 7
    %v1004 = vsub.s32 0, %v1003
    %v1005 = vrot.slane %v44, %v1004
    %1006 = vmatprep.subr.mxu0 0.0
    %1007 = vmatpush1.msra.mxu0 %v986
    %1008 = vmatprep.subr.mxu0 0.0
    %1009 = vmatpush1.msra.mxu0 %v987
    %1010 = vmatprep.subr.mxu0 0.0
    %1011 = vmatpush1.msra.mxu0 %v988
    %1012 = vmatprep.subr.mxu0 0.0
    %1013 = vmatpush1.msra.mxu0 %v989
    %1014 = vmatprep.subr.mxu0 0.0
    %1015 = vmatpush1.msra.mxu0 %v990
    %1016 = vmatprep.subr.mxu0 0.0
    %1017 = vmatpush1.msra.mxu0 %v991
    %1018 = vmatprep.subr.mxu0 0.0
    %1019 = vmatpush1.msra.mxu0 %v992
    %1020 = vmatprep.subr.mxu0 0.0
    %1021 = vmatpush1.msra.mxu0 %v993
    %1022 = vmatprep.subr.mxu0 0.0
    %1023 = vmatpush1.msra.mxu0 %v994
    %1024 = vmatprep.subr.mxu0 0.0
    %1025 = vmatpush1.msra.mxu0 %v995
    %1026 = vmatprep.subr.mxu0 0.0
    %1027 = vmatpush1.msra.mxu0 %v996
    %1028 = vmatprep.subr.mxu0 0.0
    %1029 = vmatpush1.msra.mxu0 %v997
    %1030 = vmatprep.subr.mxu0 0.0
    %1031 = vmatpush1.msra.mxu0 %v998
    %1032 = vmatprep.subr.mxu0 0.0
    %1033 = vmatpush1.msra.mxu0 %v999
    %1034 = vmatprep.subr.mxu0 0.0
    %1035 = vmatpush1.msra.mxu0 %v1000
    %1036 = vmatprep.subr.mxu0 0.0
    %1037 = vmatpush1.msra.mxu0 %v1001
    %1038 = vmatprep.subr.mxu0 0.0
    %1039 = vmatpush1.msra.mxu0 0.0
    %1040 = vmatprep.subr.mxu0 0.0
    %1041 = vmatpush1.msra.mxu0 0.0
    %1042 = vmatprep.subr.mxu0 0.0
    %1043 = vmatpush1.msra.mxu0 0.0
    %1044 = vmatprep.subr.mxu0 0.0
    %1045 = vmatpush1.msra.mxu0 0.0
    %1046 = vmatprep.subr.mxu0 0.0
    %1047 = vmatpush1.msra.mxu0 0.0
    %1048 = vmatprep.subr.mxu0 0.0
    %1049 = vmatpush1.msra.mxu0 0.0
    %1050 = vmatprep.subr.mxu0 0.0
    %1051 = vmatpush1.msra.mxu0 0.0
    %1052 = vmatprep.subr.mxu0 0.0
    %1053 = vmatpush1.msra.mxu0 0.0
    %1054 = vmatprep.subr.mxu0 0.0
    %1055 = vmatpush1.msra.mxu0 0.0
    %1056 = vmatprep.subr.mxu0 0.0
    %1057 = vmatpush1.msra.mxu0 0.0
    %1058 = vmatprep.subr.mxu0 0.0
    %1059 = vmatpush1.msra.mxu0 0.0
    %1060 = vmatprep.subr.mxu0 0.0
    %1061 = vmatpush1.msra.mxu0 0.0
    %1062 = vmatprep.subr.mxu0 0.0
    %1063 = vmatpush1.msra.mxu0 0.0
    %1064 = vmatprep.subr.mxu0 0.0
    %1065 = vmatpush1.msra.mxu0 0.0
    %1066 = vmatprep.subr.mxu0 0.0
    %1067 = vmatpush1.msra.mxu0 0.0
    %1068 = vmatprep.subr.mxu0 0.0
    %1069 = vmatpush1.msra.mxu0 0.0
    %1070 = vmatprep.mubr.f32.mxu0 0.0
    %1071 = vmatmul.mubr.f32.gmra.mrb[0].mxu0 %v985
    %v1072 = vpop.f32.mrb[0].mxu0
    %v1073 = vadd.f32 %v1005, %v1072
    %v1074 = vpop.f32.mrb[0].mxu0
    %1075 = vdwg.mxu0
    %v1076 = vsub.f32 0.0, %v1073
    %v1077 = vmul.f32 %v1076, 1.442695
    %v1078 = vpow.pop %v1077
    %v1079 = vadd.f32 %v1078, 1.0
    %v1080 = vrcp.pop %v1079
    %v1081 = vmul.f32 1.0, %v1080
    %vm1082 = vcmp.lt.s32.totalorder %v78, 3
    %v1083 = vsel %vm1082, %v1073, %v1081
    %vm1084 = vcmp.lt.s32.totalorder %v78, 6
    %v1085 = vmul.f32 %v1083, 2.0
    %v1086 = vsub.f32 %v1085, 1.0
    %v1087 = vsel %vm1084, %v1086, %v1083
    %1088 = vst [vmem:[#allocation7] sm:$0xf] %v1087
    // Predicated region
    $region18: #{tpu_custom_call.1} parent=1 // pred_check
      _
    $region19: #{tpu_custom_call.1} parent=1 // pred_check_branch
      %1090 = sbr.rel (0) target = $region21
    $region20: #{tpu_custom_call.1} parent=1 // pred_region
      %s1092 = ssub.s32 64, 64
      %1093 = vsyncadd [#allocation4], %s1092
      %s1095 = sshll.u32 [#allocation7], 4
      %s1096 = int_to_ptr.vmem [resolvable:$true] %s1095
      %1098 = dma.vmem_to_hbm [thread:$0]  %s1096, 64, %s2, [#allocation4]
    $region21: #{tpu_custom_call.1} parent=1 // pred_fallthru
      _
    // Predicated region
    $region22: #{tpu_custom_call.1} parent=1 // pred_check
      _
    $region23: #{tpu_custom_call.1} parent=1 // pred_check_branch
      %1100 = sbr.rel (0) target = $region25
    $region24: #{tpu_custom_call.1} parent=1 // pred_region
      %1101 = dma.done [#allocation4], 64
    $region25: #{tpu_custom_call.1} parent=1 // pred_fallthru
      _
    %1102 = vsyncpa [#allocation3], 1
    %1103 = vsyncpa [#allocation6], 1
    %1104 = vsyncpa [#allocation4], 1

</llo_original>
